<compile_context>
chip_gen: v5e
topology: v5e:2x2
jax: 0.10.0
libtpu: 0.0.40
codegen_flags: <defaults>
</compile_context>

<pallas_src>
import functools
import math

import jax
import jax.numpy as jnp
from jax.experimental import pallas as pl
from jax.experimental.pallas import tpu as pltpu


def _chebynet_kernel(lt_ref, xt_ref, wbig_ref, ot_ref, zall_ref, *,
                     K, rows, row_stride, compute_dtype):
    # lt_ref:   (N, N)                   = L^T            (compute_dtype, whole VMEM)
    # xt_ref:   (rows, N)                = x^T for this batch shard (f32)
    # wbig_ref: (Bs*Cout, K*row_stride)  = fused block-diagonal weights (f32)
    # ot_ref:   (Bs*Cout, N)             = relu(result)^T for this shard
    # zall_ref: (K*row_stride, N) f32 VMEM scratch stashing every z_k.
    if row_stride != rows:
        # Padding rows would otherwise hold stale VMEM garbage; their weight
        # columns are zero but NaN*0 = NaN, so clear once.
        zall_ref[...] = jnp.zeros_like(zall_ref)

    x_t = xt_ref[...]                                    # (rows, N) f32
    zall_ref[0:rows, :] = x_t                            # z_0^T = x^T (identity term, no matmul)

    lt = lt_ref[...]                                     # (N, N), compute_dtype
    z = x_t                                              # carried in f32 between steps
    # Recurrence: z_k^T = z_{k-1}^T @ L^T.  Dominant matmul -> bf16 MXU inputs
    # (when compute_dtype=bf16) with f32 accumulation.
    # TODO(synk): for large K use lax.fori_loop with z carried in scratch.
    for k in range(1, K):
        z = jnp.dot(z.astype(compute_dtype), lt,
                    preferred_element_type=jnp.float32)  # (rows, N) f32
        zall_ref[k * row_stride:k * row_stride + rows, :] = z

    # Single fused weight application over all k and all batches of the shard:
    # acc[b*Cout+o, n] = sum_{k,c} W_k[c,o] * z_k,b[c,n]   (kept in f32).
    acc = jnp.dot(wbig_ref[...], zall_ref[...],
                  preferred_element_type=jnp.float32)    # (Bs*Cout, N)
    ot_ref[...] = jnp.maximum(acc, 0.0).astype(ot_ref.dtype)


def chebynet_forward(x, L, weights, *, compute_dtype=jnp.float32,
                     num_shards=1, vmem_limit_bytes=64 * 1024 * 1024):
    """x: (B, N, Cin) f32, L: (N, N) f32, weights: (K, Cin, Cout) f32.

    compute_dtype: dtype of the MXU inputs of the propagation matmul
                   (jnp.bfloat16 => ~2-3x MXU throughput, f32 accumulation).
    num_shards:    leading 'parallel' grid axis splitting the batch (set 2 on
                   v7x to use both TensorCores; leave 1 on v5e/v6e).
    vmem_limit_bytes: raise toward ~100 MiB on v5e/v6e for large untiled N.
    """
    B, N, Cin = x.shape
    K, _, Cout = weights.shape
    assert B % num_shards == 0, "num_shards must divide the batch"
    Bs = B // num_shards
    rows = Bs * Cin
    if num_shards > 1:
        # Blocked (sublane) dims must be 8-aligned when not the full array.
        assert rows % 8 == 0 and (Bs * Cout) % 8 == 0, (
            "per-shard row blocks must be multiples of 8")
    # Row offsets inside the f32 z-stash must stay sublane-aligned.
    row_stride = ((rows + 7) // 8) * 8

    # Layout plumbing in the wrapper (cheap XLA ops); the kernel sees the
    # transposed, batch-fused operands with a lane-dense N dimension.
    xt = jnp.transpose(x, (0, 2, 1)).reshape(B * Cin, N)      # (B*Cin, N) f32
    lt = jnp.transpose(L).astype(compute_dtype)               # (N, N) = L^T

    # Fused 2-D weight slab: block-diagonal over the per-shard batch, stacked
    # over k along columns.  Wbig[b*Cout+o, k*row_stride + b*Cin + c] = W_k[c, o].
    wt = jnp.transpose(weights, (0, 2, 1))                    # (K, Cout, Cin)
    eyeB = jnp.eye(Bs, dtype=weights.dtype)
    wblk = jnp.einsum('bd,koc->bokdc', eyeB, wt)              # (Bs,Cout,K,Bs,Cin)
    wblk = wblk.reshape(Bs * Cout, K, Bs * Cin)
    if row_stride != rows:
        wblk = jnp.pad(wblk, ((0, 0), (0, 0), (0, row_stride - rows)))
    wbig = wblk.reshape(Bs * Cout, K * row_stride)            # f32, lane-dense 2-D

    kernel = functools.partial(_chebynet_kernel, K=K, rows=rows,
                               row_stride=row_stride, compute_dtype=compute_dtype)

    out_t = pl.pallas_call(
        kernel,
        out_shape=jax.ShapeDtypeStruct((B * Cout, N), x.dtype),
        grid=(num_shards,),
        in_specs=[
            # Grid-invariant operands: whole-array, single-buffered VMEM.
            pl.BlockSpec(memory_space=pltpu.MemorySpace.VMEM),   # L^T
            # Batch shard of x^T (blocked along rows by the parallel axis).
            pl.BlockSpec((rows, N), lambda s: (s, 0)),
            pl.BlockSpec(memory_space=pltpu.MemorySpace.VMEM),   # fused weights
        ],
        out_specs=pl.BlockSpec((Bs * Cout, N), lambda s: (s, 0)),
        scratch_shapes=[pltpu.VMEM((K * row_stride, N), jnp.float32)],
        compiler_params=pltpu.CompilerParams(
            dimension_semantics=("parallel",),
            vmem_limit_bytes=vmem_limit_bytes),
    )(lt, xt, wbig)

    out = out_t.reshape(B, Cout, N)
    return jnp.transpose(out, (0, 2, 1))                      # (B, N, Cout)


def _reference_forward(x, L, weights):
    K = weights.shape[0]
    N = L.shape[0]
    adjs = [jnp.eye(N, dtype=L.dtype)]
    if K > 1:
        adjs.append(L)
    for _ in range(2, K):
        adjs.append(jnp.matmul(adjs[-1], L))
    result = None
    for k in range(K):
        out = jnp.matmul(jnp.matmul(adjs[k], x), weights[k])
        result = out if result is None else result + out
    return jax.nn.relu(result)


if __name__ == "__main__":
    # Small, forward-consistent shapes.
    B, N, Cin, Cout, K = 2, 16, 8, 32, 3

    key = jax.random.PRNGKey(0)
    kx, kL, kw = jax.random.split(key, 3)

    x = jax.random.normal(kx, (B, N, Cin), dtype=jnp.float32)
    L = jax.random.normal(kL, (N, N), dtype=jnp.float32) / math.sqrt(N)

    # Xavier-normal init (matches nn.init.xavier_normal_ on (Cin, Cout)).
    std = math.sqrt(2.0 / (Cin + Cout))
    weights = std * jax.random.normal(kw, (K, Cin, Cout), dtype=jnp.float32)

    ref = jax.block_until_ready(_reference_forward(x, L, weights))

    # 1) f32 propagation, single grid step (thickest B*Cin stream).
    out = jax.block_until_ready(chebynet_forward(x, L, weights))
    assert out.shape == (B, N, Cout)
    assert jnp.allclose(out, ref, atol=1e-4, rtol=1e-4), float(
        jnp.max(jnp.abs(out - ref)))

    # 2) f32, batch split across a 'parallel' grid axis (engages both TCs on v7x).
    out2 = jax.block_until_ready(chebynet_forward(x, L, weights, num_shards=2))
    assert jnp.allclose(out2, ref, atol=1e-4, rtol=1e-4), float(
        jnp.max(jnp.abs(out2 - ref)))

    # 3) bf16 MXU inputs for the propagation matmul (f32 accumulation, f32
    #    weight path) -> bf16-level tolerance.
    out3 = jax.block_until_ready(
        chebynet_forward(x, L, weights, compute_dtype=jnp.bfloat16))
    assert jnp.allclose(out3, ref, atol=1e-1, rtol=1e-1), float(
        jnp.max(jnp.abs(out3 - ref)))

    print("KERNEL_OK")
</pallas_src>

<mosaic_0001>
module attributes {stable_mosaic.version = 11 : i64} {
  func.func @_chebynet_kernel(%arg0: i32, %arg1: memref<16x16xf32, #tpu.memory_space<vmem>>, %arg2: memref<16x16xf32, #tpu.memory_space<vmem>>, %arg3: memref<64x48xf32, #tpu.memory_space<vmem>>, %arg4: memref<64x16xf32, #tpu.memory_space<vmem>>, %arg5: memref<48x16xf32, #tpu.memory_space<vmem>>) attributes {dimension_semantics = [#tpu.dimension_semantics<parallel>], iteration_bounds = array<i64: 1>, scalar_prefetch = 0 : i64, scratch_operands = 1 : i64, tpu.core_type = #tpu.core_type<tc>, window_params = [{pipeline_mode = #tpu.pipeline_mode<synchronous>, transform_indices = @transform_0, window_bounds = array<i64: 16, 16>}, {transform_indices = @transform_1, window_bounds = array<i64: 16, 16>}, {pipeline_mode = #tpu.pipeline_mode<synchronous>, transform_indices = @transform_2, window_bounds = array<i64: 64, 48>}, {transform_indices = @transform_3, window_bounds = array<i64: 64, 16>}]} {
    %c0 = arith.constant 0 : index
    %c0_0 = arith.constant 0 : index
    %0 = vector.load %arg2[%c0, %c0_0] : memref<16x16xf32, #tpu.memory_space<vmem>>, vector<16x16xf32>
    %c0_1 = arith.constant 0 : index
    %c0_2 = arith.constant 0 : index
    %1 = vector.load %arg5[%c0_1, %c0_2] : memref<48x16xf32, #tpu.memory_space<vmem>>, vector<16x16xf32>
    tpu.vector_store %arg5[%c0_1, %c0_2], %0 {strides = array<i32>} : memref<48x16xf32, #tpu.memory_space<vmem>>, vector<16x16xf32>,
    %c0_3 = arith.constant 0 : index
    %c0_4 = arith.constant 0 : index
    %2 = vector.load %arg1[%c0_3, %c0_4] : memref<16x16xf32, #tpu.memory_space<vmem>>, vector<16x16xf32>
    %cst = arith.constant dense<0.000000e+00> : vector<16x16xf32>
    %3 = tpu.matmul %0, %2, %cst {dimension_numbers = #tpu.dot_dimension_numbers<[1], [0], [0], [1], [0, 0, 1, 1], [], []>} : vector<16x16xf32>, vector<16x16xf32>, vector<16x16xf32> -> vector<16x16xf32>
    %c16 = arith.constant 16 : index
    %c0_5 = arith.constant 0 : index
    %4 = vector.load %arg5[%c16, %c0_5] : memref<48x16xf32, #tpu.memory_space<vmem>>, vector<16x16xf32>
    tpu.vector_store %arg5[%c16, %c0_5], %3 {strides = array<i32>} : memref<48x16xf32, #tpu.memory_space<vmem>>, vector<16x16xf32>,
    %cst_6 = arith.constant dense<0.000000e+00> : vector<16x16xf32>
    %5 = tpu.matmul %3, %2, %cst_6 {dimension_numbers = #tpu.dot_dimension_numbers<[1], [0], [0], [1], [0, 0, 1, 1], [], []>} : vector<16x16xf32>, vector<16x16xf32>, vector<16x16xf32> -> vector<16x16xf32>
    %c32 = arith.constant 32 : index
    %c0_7 = arith.constant 0 : index
    %6 = vector.load %arg5[%c32, %c0_7] : memref<48x16xf32, #tpu.memory_space<vmem>>, vector<16x16xf32>
    tpu.vector_store %arg5[%c32, %c0_7], %5 {strides = array<i32>} : memref<48x16xf32, #tpu.memory_space<vmem>>, vector<16x16xf32>,
    %c0_8 = arith.constant 0 : index
    %c0_9 = arith.constant 0 : index
    %7 = vector.load %arg3[%c0_8, %c0_9] : memref<64x48xf32, #tpu.memory_space<vmem>>, vector<64x48xf32>
    %c0_10 = arith.constant 0 : index
    %c0_11 = arith.constant 0 : index
    %8 = vector.load %arg5[%c0_10, %c0_11] : memref<48x16xf32, #tpu.memory_space<vmem>>, vector<48x16xf32>
    %cst_12 = arith.constant dense<0.000000e+00> : vector<64x16xf32>
    %9 = tpu.matmul %7, %8, %cst_12 {dimension_numbers = #tpu.dot_dimension_numbers<[1], [0], [0], [1], [0, 0, 1, 1], [], []>} : vector<64x48xf32>, vector<48x16xf32>, vector<64x16xf32> -> vector<64x16xf32>
    %cst_13 = arith.constant 0.000000e+00 : f32
    %10 = vector.broadcast %cst_13 : f32 to vector<64x16xf32>
    %11 = arith.maximumf %9, %10 : vector<64x16xf32>
    %c0_14 = arith.constant 0 : index
    %c0_15 = arith.constant 0 : index
    %12 = vector.load %arg4[%c0_14, %c0_15] : memref<64x16xf32, #tpu.memory_space<vmem>>, vector<64x16xf32>
    tpu.vector_store %arg4[%c0_14, %c0_15], %11 {strides = array<i32>} : memref<64x16xf32, #tpu.memory_space<vmem>>, vector<64x16xf32>,
    return
  }
  func.func @transform_0(%arg0: i32) -> (i32, i32) {
    %c0_i32 = arith.constant 0 : i32
    %c0_i32_0 = arith.constant 0 : i32
    %c0_i32_1 = arith.constant 0 : i32
    return %c0_i32, %c0_i32_0 : i32, i32
  }
  func.func @transform_1(%arg0: i32) -> (i32, i32) {
    %c0_i32 = arith.constant 0 : i32
    %c0_i32_0 = arith.constant 0 : i32
    return %arg0, %c0_i32 : i32, i32
  }
  func.func @transform_2(%arg0: i32) -> (i32, i32) {
    %c0_i32 = arith.constant 0 : i32
    %c0_i32_0 = arith.constant 0 : i32
    %c0_i32_1 = arith.constant 0 : i32
    return %c0_i32, %c0_i32_0 : i32, i32
  }
  func.func @transform_3(%arg0: i32) -> (i32, i32) {
    %c0_i32 = arith.constant 0 : i32
    %c0_i32_0 = arith.constant 0 : i32
    return %arg0, %c0_i32 : i32, i32
  }
}

</mosaic_0001>

<llo_original>
// kernel: tpu_custom_call.1
$region0: #{tpu_custom_call.1}
  #allocation0 [shape = 'u32[]', space=smem, size = 0x4, offset = 0x4, fixed_abs, tag = 'smem constant byte address 0x4 - core index']
  #allocation1 [shape = 'u32[72,128]{1,0:T(1,128)}', space=vmem, size = 0x9000, scoped, tag = 'internal scratch']
  #allocation2 [shape = 'f32[48,16]{1,0:T(8,128)}', space=vmem, size = 0x6000, scoped, tag = 'scratch operand']
  %s0 = inlined_call_operand.vmem [shape: f32[16,16], index: 0, kind: input, shape index: {}]
  %s1 = inlined_call_operand.vmem [shape: f32[16,16], index: 1, kind: input, shape index: {}]
  %s2 = inlined_call_operand.vmem [shape: f32[64,48], index: 2, kind: input, shape index: {}]
  %s3 = inlined_call_operand.vmem [shape: f32[64,16], index: 3, kind: output, shape index: {}]
  %s4 = sld [smem:[#allocation0]]
  $region22: #{tpu_custom_call.1} parent=0
    _
  %s6 = ssub.s32 1, %s4
  %s7 = scalar_select 0, %s6, %s4
  // Predicated region
  $region2: #{tpu_custom_call.1} parent=0 // pred_check
    _
  $region3: #{tpu_custom_call.1} parent=0 // pred_check_branch
    %9 = sbr.rel (0) target = $region5
  $region4: #{tpu_custom_call.1} parent=0 // pred_region
    _
  $region5: #{tpu_custom_call.1} parent=0 // pred_fallthru
    _
  // Predicated region
  $region6: #{tpu_custom_call.1} parent=0 // pred_check
    _
  $region7: #{tpu_custom_call.1} parent=0 // pred_check_branch
    %11 = sbr.rel (0) target = $region9
  $region8: #{tpu_custom_call.1} parent=0 // pred_region
    _
  $region9: #{tpu_custom_call.1} parent=0 // pred_fallthru
    _
  // Predicated region
  $region10: #{tpu_custom_call.1} parent=0 // pred_check
    _
  $region11: #{tpu_custom_call.1} parent=0 // pred_check_branch
    %13 = sbr.rel (0) target = $region13
  $region12: #{tpu_custom_call.1} parent=0 // pred_region
    _
  $region13: #{tpu_custom_call.1} parent=0 // pred_fallthru
    _
  %v14 = vld [vmem:[%s1] sm:$0xff]
  %v15 = vld [vmem:[%s1 + $0x8] sm:$0xff]
  %vm16 = vcmask 130048
  %17 = vst.msk [vmem:[#allocation2] sm:$0xff] %vm16, %v14
  %18 = vst.msk [vmem:[#allocation2 + $0x8] sm:$0xff] %vm16, %v15
  %v19 = vld [vmem:[%s0] sm:$0xff]
  %v20 = vld [vmem:[%s0 + $0x8] sm:$0xff]
  %v22 = vsel %vm16, %v14, 0
  %v25 = vsel %vm16, %v15, 0
  %27 = vmatpush.msra.mxu0 0.0
  %28 = vmatpush.msra.mxu0 0.0
  %29 = vmatpush.msra.mxu0 0.0
  %30 = vmatpush.msra.mxu0 0.0
  %31 = vmatpush.msra.mxu0 0.0
  %32 = vmatpush.msra.mxu0 0.0
  %33 = vmatpush.msra.mxu0 0.0
  %34 = vmatpush.msra.mxu0 0.0
  %35 = vmatpush.msra.mxu0 0.0
  %36 = vmatpush.msra.mxu0 0.0
  %37 = vmatpush.msra.mxu0 0.0
  %38 = vmatpush.msra.mxu0 0.0
  %39 = vmatpush.msra.mxu0 0.0
  %40 = vmatpush.msra.mxu0 0.0
  %41 = vmatpush.msra.mxu0 %v20
  %42 = vmatpush.msra.mxu0 %v19
  %43 = vmatmul.f32.gmra.mxu0 %v22
  %v44 = vpop.f32.mrf.mxu0
  %v45 = vadd.f32 0.0, %v44
  %46 = vmatmul.f32.gmra.mxu0 %v25
  %v47 = vpop.f32.mrf.mxu0
  %v48 = vadd.f32 0.0, %v47
  %49 = vdwg.mxu0
  %50 = vst.msk [vmem:[#allocation2 + $0x10] sm:$0xff] %vm16, %v45
  %51 = vst.msk [vmem:[#allocation2 + $0x18] sm:$0xff] %vm16, %v48
  %v53 = vsel %vm16, %v45, 0
  %v56 = vsel %vm16, %v48, 0
  %58 = vmatpush.msra.mxu0 0.0
  %59 = vmatpush.msra.mxu0 0.0
  %60 = vmatpush.msra.mxu0 0.0
  %61 = vmatpush.msra.mxu0 0.0
  %62 = vmatpush.msra.mxu0 0.0
  %63 = vmatpush.msra.mxu0 0.0
  %64 = vmatpush.msra.mxu0 0.0
  %65 = vmatpush.msra.mxu0 0.0
  %66 = vmatpush.msra.mxu0 0.0
  %67 = vmatpush.msra.mxu0 0.0
  %68 = vmatpush.msra.mxu0 0.0
  %69 = vmatpush.msra.mxu0 0.0
  %70 = vmatpush.msra.mxu0 0.0
  %71 = vmatpush.msra.mxu0 0.0
  %72 = vmatpush.msra.mxu0 %v20
  %73 = vmatpush.msra.mxu0 %v19
  %74 = vmatmul.f32.gmra.mxu0 %v53
  %v75 = vpop.f32.mrf.mxu0
  %v76 = vadd.f32 0.0, %v75
  %77 = vmatmul.f32.gmra.mxu0 %v56
  %v78 = vpop.f32.mrf.mxu0
  %v79 = vadd.f32 0.0, %v78
  %80 = vdwg.mxu0
  %81 = vst.msk [vmem:[#allocation2 + $0x20] sm:$0xff] %vm16, %v76
  %82 = vst.msk [vmem:[#allocation2 + $0x28] sm:$0xff] %vm16, %v79
  %v83 = vld [vmem:[%s2] sm:$0xff]
  %v84 = vld [vmem:[%s2 + $0x8] sm:$0xff]
  %v85 = vld [vmem:[%s2 + $0x10] sm:$0xff]
  %v86 = vld [vmem:[%s2 + $0x18] sm:$0xff]
  %v87 = vld [vmem:[%s2 + $0x20] sm:$0xff]
  %v88 = vld [vmem:[%s2 + $0x28] sm:$0xff]
  %v89 = vld [vmem:[%s2 + $0x30] sm:$0xff]
  %v90 = vld [vmem:[%s2 + $0x38] sm:$0xff]
  %v91 = vld [vmem:[#allocation2] sm:$0xff]
  %v92 = vld [vmem:[#allocation2 + $0x8] sm:$0xff]
  %v93 = vld [vmem:[#allocation2 + $0x10] sm:$0xff]
  %v94 = vld [vmem:[#allocation2 + $0x18] sm:$0xff]
  %v95 = vld [vmem:[#allocation2 + $0x20] sm:$0xff]
  %v96 = vld [vmem:[#allocation2 + $0x28] sm:$0xff]
  %vm97 = vcmask 392192
  %v99 = vsel %vm97, %v83, 0
  %v102 = vsel %vm97, %v84, 0
  %v105 = vsel %vm97, %v85, 0
  %v108 = vsel %vm97, %v86, 0
  %v111 = vsel %vm97, %v87, 0
  %v114 = vsel %vm97, %v88, 0
  %v117 = vsel %vm97, %v89, 0
  %v120 = vsel %vm97, %v90, 0
  %122 = vmatpush.msra.mxu0 0.0
  %123 = vmatpush.msra.mxu0 0.0
  %124 = vmatpush.msra.mxu0 0.0
  %125 = vmatpush.msra.mxu0 0.0
  %126 = vmatpush.msra.mxu0 0.0
  %127 = vmatpush.msra.mxu0 0.0
  %128 = vmatpush.msra.mxu0 0.0
  %129 = vmatpush.msra.mxu0 0.0
  %130 = vmatpush.msra.mxu0 0.0
  %131 = vmatpush.msra.mxu0 0.0
  %132 = vmatpush.msra.mxu0 %v96
  %133 = vmatpush.msra.mxu0 %v95
  %134 = vmatpush.msra.mxu0 %v94
  %135 = vmatpush.msra.mxu0 %v93
  %136 = vmatpush.msra.mxu0 %v92
  %137 = vmatpush.msra.mxu0 %v91
  %138 = vmatmul.f32.gmra.mxu0 %v99
  %v139 = vpop.f32.mrf.mxu0
  %v140 = vadd.f32 0.0, %v139
  %141 = vmatmul.f32.gmra.mxu0 %v102
  %v142 = vpop.f32.mrf.mxu0
  %v143 = vadd.f32 0.0, %v142
  %144 = vmatmul.f32.gmra.mxu0 %v105
  %v145 = vpop.f32.mrf.mxu0
  %v146 = vadd.f32 0.0, %v145
  %147 = vmatmul.f32.gmra.mxu0 %v108
  %v148 = vpop.f32.mrf.mxu0
  %v149 = vadd.f32 0.0, %v148
  %150 = vmatmul.f32.gmra.mxu0 %v111
  %v151 = vpop.f32.mrf.mxu0
  %v152 = vadd.f32 0.0, %v151
  %153 = vmatmul.f32.gmra.mxu0 %v114
  %v154 = vpop.f32.mrf.mxu0
  %v155 = vadd.f32 0.0, %v154
  %156 = vmatmul.f32.gmra.mxu0 %v117
  %v157 = vpop.f32.mrf.mxu0
  %v158 = vadd.f32 0.0, %v157
  %159 = vmatmul.f32.gmra.mxu0 %v120
  %v160 = vpop.f32.mrf.mxu0
  %v161 = vadd.f32 0.0, %v160
  %162 = vdwg.mxu0
  %v163 = vmax.f32 %v140, 0.0
  %v164 = vmax.f32 %v143, 0.0
  %v165 = vmax.f32 %v146, 0.0
  %v166 = vmax.f32 %v149, 0.0
  %v167 = vmax.f32 %v152, 0.0
  %v168 = vmax.f32 %v155, 0.0
  %v169 = vmax.f32 %v158, 0.0
  %v170 = vmax.f32 %v161, 0.0
  %171 = vst.msk [vmem:[%s3] sm:$0xff] %vm16, %v163
  %172 = vst.msk [vmem:[%s3 + $0x8] sm:$0xff] %vm16, %v164
  %173 = vst.msk [vmem:[%s3 + $0x10] sm:$0xff] %vm16, %v165
  %174 = vst.msk [vmem:[%s3 + $0x18] sm:$0xff] %vm16, %v166
  %175 = vst.msk [vmem:[%s3 + $0x20] sm:$0xff] %vm16, %v167
  %176 = vst.msk [vmem:[%s3 + $0x28] sm:$0xff] %vm16, %v168
  %177 = vst.msk [vmem:[%s3 + $0x30] sm:$0xff] %vm16, %v169
  %178 = vst.msk [vmem:[%s3 + $0x38] sm:$0xff] %vm16, %v170
  // Predicated region
  $region14: #{tpu_custom_call.1} parent=0 // pred_check
    _
  $region15: #{tpu_custom_call.1} parent=0 // pred_check_branch
    %180 = sbr.rel (0) target = $region17
  $region16: #{tpu_custom_call.1} parent=0 // pred_region
    _
  $region17: #{tpu_custom_call.1} parent=0 // pred_fallthru
    _
  // Predicated region
  $region18: #{tpu_custom_call.1} parent=0 // pred_check
    _
  $region19: #{tpu_custom_call.1} parent=0 // pred_check_branch
    %182 = sbr.rel (0) target = $region21
  $region20: #{tpu_custom_call.1} parent=0 // pred_region
    _
  $region21: #{tpu_custom_call.1} parent=0 // pred_fallthru
    _

</llo_original>
